<compile_context>
chip_gen: v5e
topology: v5e:2x2
jax: 0.10.0
libtpu: 0.0.40
codegen_flags: <defaults>
</compile_context>

<pallas_src>
import functools

import jax
import jax.numpy as jnp
from jax.experimental import pallas as pl
from jax.experimental.pallas import tpu as pltpu


# 3 arrays (x, pe, out) x 2 pipeline buffers must stay under this budget.
_VMEM_BUDGET_BYTES = 24 * 1024 * 1024
# Explicit scoped-VMEM limit passed to Mosaic; >= budget, and <= physical VMEM
# on every generation (v5e/v6e: 128 MiB, v7x: 64 MiB).
_VMEM_LIMIT_BYTES = 32 * 1024 * 1024


def _add_pe_kernel(x_ref, pe_ref, o_ref):
    # Elementwise add on one (bs, cols) tile; compute in f32 (v5e has no bf16
    # VALU), store in the output dtype.
    o_ref[...] = (x_ref[...].astype(jnp.float32)
                  + pe_ref[...].astype(jnp.float32)).astype(o_ref.dtype)


def _sublane_multiple(dtype):
    """Native sublane packing: f32 -> 8, bf16 -> 16, int8/fp8 -> 32."""
    return max(8, 32 // jnp.dtype(dtype).itemsize)


def _round_block_rows(bs, rows, dtype):
    """Round bs down so the block's sublane dim is legal and well-packed."""
    sub = _sublane_multiple(dtype)
    if rows >= sub:
        return max(sub, (bs // sub) * sub)
    if rows >= 8:
        return max(8, (bs // 8) * 8)
    return max(1, min(bs, rows))  # rows < 8: block must equal the full extent


def _choose_block_rows(rows, cols, dtype, *,
                       vmem_budget_bytes=_VMEM_BUDGET_BYTES, min_grid_steps=4):
    """Biggest tile that fits the VMEM budget, but keep >= min_grid_steps grid
    steps when rows allow it (pipelining + v7x dual-TensorCore sharding)."""
    itemsize = jnp.dtype(dtype).itemsize
    sub = _sublane_multiple(dtype)
    max_rows_vmem = max(sub, vmem_budget_bytes // (6 * cols * itemsize))
    target_rows = pl.cdiv(rows, min_grid_steps)
    bs = min(rows, max_rows_vmem, max(target_rows, sub))
    return _round_block_rows(bs, rows, dtype)


def _add_pe_pallas(x2d, pe2d, block_rows=None):
    """out[r, c] = x2d[r, c] + pe2d[r, c], streaming over the row axis.
    pe2d may have MORE rows than x2d (full pe buffer); only the needed blocks
    are DMA'd by the BlockSpec index_map. NOTE: x2d's buffer is donated to the
    output via input_output_aliases."""
    rows, cols = x2d.shape
    dtype = x2d.dtype
    itemsize = jnp.dtype(dtype).itemsize

    if block_rows is None:
        bs = _choose_block_rows(rows, cols, dtype)
    else:
        bs = _round_block_rows(min(block_rows, rows), rows, dtype)
    bs = max(1, min(bs, rows))

    grid = (pl.cdiv(rows, bs),)
    cost = pl.CostEstimate(
        flops=rows * cols,
        transcendentals=0,
        bytes_accessed=rows * cols * (2 * itemsize + jnp.dtype(pe2d.dtype).itemsize),
    )

    return pl.pallas_call(
        _add_pe_kernel,
        out_shape=jax.ShapeDtypeStruct((rows, cols), dtype),
        grid=grid,
        in_specs=[
            pl.BlockSpec((bs, cols), lambda i: (i, 0)),  # x tile
            pl.BlockSpec((bs, cols), lambda i: (i, 0)),  # pe tile (same block index)
        ],
        out_specs=pl.BlockSpec((bs, cols), lambda i: (i, 0)),
        input_output_aliases={0: 0},  # reuse x's HBM buffer for the output
        cost_estimate=cost,
        compiler_params=pltpu.CompilerParams(
            dimension_semantics=("parallel",),      # v7x: shard seq axis over 2 TCs
            vmem_limit_bytes=_VMEM_LIMIT_BYTES,     # consistent budget on v5e..v7x
        ),
    )(x2d, pe2d)


def make_position_encoding(d_model=2, max_len=6, dtype=jnp.float32):
    """Build the sinusoidal pe buffer exactly like the PyTorch __init__ (in f32,
    then cast to the storage dtype — match the embedding dtype to halve pe HBM
    traffic). Also precomputes a lane-dense flat view for narrow d_model so the
    forward pass never slices/reshapes pe. Returns (pe, pe_flat_or_None)."""
    assert d_model % 2 == 0, "d_model must be even (matches the PyTorch slicing)"
    position = jnp.arange(0, max_len, 1, dtype=jnp.float32)[:, None]        # (max_len, 1)
    embedding_index = jnp.arange(0, d_model, 2, dtype=jnp.float32)          # (d_model//2,)
    div_term = 1.0 / jnp.power(jnp.float32(10000.0), embedding_index / d_model)
    pe = jnp.zeros((max_len, d_model), dtype=jnp.float32)
    pe = pe.at[:, 0::2].set(jnp.sin(position * div_term))
    pe = pe.at[:, 1::2].set(jnp.cos(position * div_term))
    pe = pe.astype(dtype)

    pe_flat = None
    if (d_model % 128 != 0) and ((max_len * d_model) % 128 == 0):
        # Row-major flatten: pe[:s].reshape(-1, 128) == pe_flat[:s*d_model//128],
        # so the kernel can index the full flat buffer with zero per-call copies.
        pe_flat = pe.reshape((max_len * d_model) // 128, 128)
    return pe, pe_flat


def position_encoding_forward(word_embeddings, pe, pe_flat=None, *, block_rows=None,
                              min_bytes_for_pallas=256 * 1024):
    """forward(x) = x + pe[:x.shape[0], :] (result dtype follows x)."""
    seq_len, d_model = word_embeddings.shape
    if seq_len > pe.shape[0]:
        raise ValueError(f"seq_len={seq_len} exceeds max_len={pe.shape[0]}")
    out_dtype = word_embeddings.dtype
    itemsize = jnp.dtype(out_dtype).itemsize

    # Tiny shapes: a pallas_call launch costs more than the work; let XLA fuse it.
    if seq_len * d_model * itemsize < min_bytes_for_pallas:
        return (word_embeddings.astype(jnp.float32)
                + pe[:seq_len, :].astype(jnp.float32)).astype(out_dtype)

    use_lane_dense = ((d_model % 128 != 0)
                      and ((seq_len * d_model) % 128 == 0)
                      and (pe_flat is not None))
    if use_lane_dense:
        # Narrow d_model: flatten x to a lane-dense (rows, 128) slab (a free
        # layout no-op for row-major arrays). pe_flat was precomputed at init,
        # so no per-call pe slice/reshape is paid.
        rows, cols = (seq_len * d_model) // 128, 128
        x2d = word_embeddings.reshape(rows, cols)
        pe2d = pe_flat if rows >= 8 else pe_flat[:rows, :]
    else:
        # Main path: pass the FULL pe buffer; the BlockSpec only DMAs the first
        # cdiv(seq_len, bs) blocks, so no wrapper-side slice copy is paid.
        rows, cols = seq_len, d_model
        x2d = word_embeddings
        # If rows < 8 the block equals the full x extent; slice pe (tiny) so the
        # same block shape is legal for it too.
        pe2d = pe if rows >= 8 else pe[:rows, :]

    out2d = _add_pe_pallas(x2d, pe2d, block_rows=block_rows)
    return out2d.reshape(seq_len, d_model) if use_lane_dense else out2d


if __name__ == "__main__":
    key = jax.random.PRNGKey(0)

    # --- Main (lane-dense d_model) path: several grid steps + a partial edge block.
    d_model, max_len, seq_len = 128, 512, 400   # 400 not a multiple of bs -> edge masking
    word_embeddings = jax.random.normal(key, (seq_len, d_model), dtype=jnp.float32)
    pe, pe_flat = make_position_encoding(d_model=d_model, max_len=max_len, dtype=jnp.float32)

    fwd = jax.jit(functools.partial(position_encoding_forward, min_bytes_for_pallas=0))
    out = jax.block_until_ready(fwd(word_embeddings, pe))

    ref = word_embeddings + pe[:seq_len, :]
    assert out.shape == (seq_len, d_model)
    assert out.dtype == word_embeddings.dtype
    assert jnp.allclose(out, ref, atol=1e-6, rtol=1e-6)

    # --- Narrow-d_model path (d_model=32 < 128): lane-dense flat pe from init.
    d2, m2, s2 = 32, 64, 48                     # 48*32 = 1536 elements, divisible by 128
    x2 = jax.random.normal(jax.random.PRNGKey(1), (s2, d2), dtype=jnp.float32)
    pe2, pe2_flat = make_position_encoding(d_model=d2, max_len=m2, dtype=jnp.float32)

    out2 = jax.block_until_ready(fwd(x2, pe2, pe2_flat))
    assert out2.shape == (s2, d2)
    assert jnp.allclose(out2, x2 + pe2[:s2, :], atol=1e-6, rtol=1e-6)

    # --- bf16 path: pe stored in bf16 (halves pe traffic), add done in f32 in-kernel,
    #     dtype-aware sublane rounding (multiples of 16).
    d3, m3, s3 = 128, 512, 256
    x3 = jax.random.normal(jax.random.PRNGKey(2), (s3, d3), dtype=jnp.float32).astype(jnp.bfloat16)
    pe3, _ = make_position_encoding(d_model=d3, max_len=m3, dtype=jnp.bfloat16)

    out3 = jax.block_until_ready(fwd(x3, pe3))
    ref3 = (x3.astype(jnp.float32) + pe3[:s3, :].astype(jnp.float32)).astype(jnp.bfloat16)
    assert out3.dtype == jnp.bfloat16
    assert jnp.allclose(out3.astype(jnp.float32), ref3.astype(jnp.float32), atol=1e-2, rtol=1e-2)

    print("KERNEL_OK")
</pallas_src>

<mosaic_0001>
module attributes {stable_mosaic.version = 11 : i64} {
  func.func @_add_pe_kernel(%arg0: i32, %arg1: memref<96x128xf32, #tpu.memory_space<vmem>>, %arg2: memref<96x128xf32, #tpu.memory_space<vmem>>, %arg3: memref<96x128xf32, #tpu.memory_space<vmem>>) attributes {dimension_semantics = [#tpu.dimension_semantics<parallel>], iteration_bounds = array<i64: 5>, scalar_prefetch = 0 : i64, scratch_operands = 0 : i64, tpu.core_type = #tpu.core_type<tc>, window_params = [{transform_indices = @transform_0, window_bounds = array<i64: 96, 128>}, {transform_indices = @transform_1, window_bounds = array<i64: 96, 128>}, {transform_indices = @transform_2, window_bounds = array<i64: 96, 128>}]} {
    %c0 = arith.constant 0 : index
    %c0_0 = arith.constant 0 : index
    %0 = vector.load %arg1[%c0, %c0_0] : memref<96x128xf32, #tpu.memory_space<vmem>>, vector<96x128xf32>
    %c0_1 = arith.constant 0 : index
    %c0_2 = arith.constant 0 : index
    %1 = vector.load %arg2[%c0_1, %c0_2] : memref<96x128xf32, #tpu.memory_space<vmem>>, vector<96x128xf32>
    %2 = arith.addf %0, %1 : vector<96x128xf32>
    %c0_3 = arith.constant 0 : index
    %c0_4 = arith.constant 0 : index
    %3 = vector.load %arg3[%c0_3, %c0_4] : memref<96x128xf32, #tpu.memory_space<vmem>>, vector<96x128xf32>
    tpu.vector_store %arg3[%c0_3, %c0_4], %2 {strides = array<i32>} : memref<96x128xf32, #tpu.memory_space<vmem>>, vector<96x128xf32>,
    return
  }
  func.func @transform_0(%arg0: i32) -> (i32, i32) {
    %c0_i32 = arith.constant 0 : i32
    %c0_i32_0 = arith.constant 0 : i32
    return %arg0, %c0_i32 : i32, i32
  }
  func.func @transform_1(%arg0: i32) -> (i32, i32) {
    %c0_i32 = arith.constant 0 : i32
    %c0_i32_0 = arith.constant 0 : i32
    return %arg0, %c0_i32 : i32, i32
  }
  func.func @transform_2(%arg0: i32) -> (i32, i32) {
    %c0_i32 = arith.constant 0 : i32
    %c0_i32_0 = arith.constant 0 : i32
    return %arg0, %c0_i32 : i32, i32
  }
}

</mosaic_0001>

<llo_original>
// kernel: position_encoding_forward.1
$region0: #{position_encoding_forward.1}
  #allocation0 [shape = 'u32[]', space=smem, size = 0x4, offset = 0x4, fixed_abs, tag = 'smem constant byte address 0x4 - core index']
  #allocation1 [shape = 'u32[72,128]{1,0:T(1,128)}', space=vmem, size = 0x9000, scoped, tag = 'internal scratch']
  %s0 = inlined_call_operand.hbm [shape: f32[400,128], index: 0, kind: input, shape index: {}, may-alias: {0,2}]
  %s1 = inlined_call_operand.vmem [shape: f32[512,128], index: 1, kind: input, shape index: {}]
  %s2 = inlined_call_operand.hbm [shape: f32[400,128], index: 2, kind: output, shape index: {}, may-alias: {0,2}]
  %s3 = sld [smem:[#allocation0]]
  $region45: #{position_encoding_forward.1} parent=0
    _
  %s5 = ssub.s32 1, %s3
  %s6 = scalar_select 0, %s5, %s3
  $region1: #{position_encoding_forward.1} parent=0
    #allocation2 [shape = 'u8[98304]{0}', space=vmem, size = 0x18000, scoped, tag = 'input window, operand 0']
    #allocation3 [shape = 's32[2]{0}', space=sflag, size = 0x8, scoped, tag = 'scoped memory for position_encoding_forward.1']
    #allocation4 [shape = 's32[2]{0}', space=sflag, size = 0x8, scoped, tag = 'scoped memory for position_encoding_forward.1']
    #allocation5 [shape = 'u8[98304]{0}', space=vmem, size = 0x18000, scoped, tag = 'output window, operand 0']
    %7 = vsyncpa [#allocation3], 0
    %s8 = scalar_lea.sflag [#allocation3], 1
    %9 = vsyncpa %s8, 0
    %10 = vsyncpa [#allocation4], 0
    %s11 = scalar_lea.sflag [#allocation4], 1
    %12 = vsyncpa %s11, 0
    loop: start=0, step=1, limit=7
    $region2: #{position_encoding_forward.1} parent=1 // loop_pre_header
      _
    $region3: #{position_encoding_forward.1} parent=1 // loop_header
      %s14 = sphi 0, %s18
      %p15 = scmp.ge.s32.totalorder %s14, 7
      %s24 = sphi 0, %s26
      %s27 = sphi 0, %s24
      %s28 = sphi 0, %s27
      %s44 = sphi 0, %s28
      %s50 = sphi 0, %s52
      %s53 = sphi 0, %s50
      %s54 = sphi 0, %s53
      %s70 = sphi 0, %s54
      %s76 = sphi 0, %s78
      %s79 = sphi 0, %s76
      %s80 = sphi 0, %s79
      %s96 = sphi 0, %s80
    $region4: #{position_encoding_forward.1} parent=1 // loop_header_branch
      %17 = sbr.rel (%p15) target = $region8
    $region5: #{position_encoding_forward.1} parent=1 // loop_body
      %s19 = ssub.s32 %s14, 1
      %s20 = ssub.s32 %s14, 2
      %s21 = sadd.s32 %s14, 1
      %s22 = ssub.s32 %s14, %s21
      %p23 = scmp.eq.s32.totalorder %s22, 0
      %s25 = sadd.s32 %s24, 1
      %s26 = scalar_select %p23, %s24, %s25
      %p29 = pneg %p23
      %p30 = scmp.eq.s32.totalorder %s14, 4
      %p31 = por %p29, %p30
      %p32 = scmp.ne.s32.totalorder %s24, %s27
      %p33 = scmp.eq.s32.totalorder %s14, 0
      %p34 = por %p32, %p33
      %p35 = scmp.ne.s32.totalorder %s24, %s27
      %p36 = scmp.eq.s32.totalorder %s19, 4
      %p37 = por %p35, %p36
      %p38 = scmp.ne.s32.totalorder %s27, %s28
      %p39 = scmp.eq.s32.totalorder %s19, 0
      %p40 = por %p38, %p39
      %p41 = scmp.ne.s32.totalorder %s27, %s28
      %p42 = scmp.eq.s32.totalorder %s20, 4
      %p43 = por %p41, %p42
      %p45 = scmp.ne.s32.totalorder %s28, %s44
      %p46 = scmp.eq.s32.totalorder %s20, 0
      %p47 = por %p45, %p46
      %s48 = ssub.s32 %s14, %s21
      %p49 = scmp.eq.s32.totalorder %s48, 0
      %s51 = sadd.s32 %s50, 1
      %s52 = scalar_select %p49, %s50, %s51
      %p55 = pneg %p49
      %p56 = scmp.eq.s32.totalorder %s14, 4
      %p57 = por %p55, %p56
      %p58 = scmp.ne.s32.totalorder %s50, %s53
      %p59 = scmp.eq.s32.totalorder %s14, 0
      %p60 = por %p58, %p59
      %p61 = scmp.ne.s32.totalorder %s50, %s53
      %p62 = scmp.eq.s32.totalorder %s19, 4
      %p63 = por %p61, %p62
      %p64 = scmp.ne.s32.totalorder %s53, %s54
      %p65 = scmp.eq.s32.totalorder %s19, 0
      %p66 = por %p64, %p65
      %p67 = scmp.ne.s32.totalorder %s53, %s54
      %p68 = scmp.eq.s32.totalorder %s20, 4
      %p69 = por %p67, %p68
      %p71 = scmp.ne.s32.totalorder %s54, %s70
      %p72 = scmp.eq.s32.totalorder %s20, 0
      %p73 = por %p71, %p72
      %s74 = ssub.s32 %s14, %s21
      %p75 = scmp.eq.s32.totalorder %s74, 0
      %s77 = sadd.s32 %s76, 1
      %s78 = scalar_select %p75, %s76, %s77
      %p81 = pneg %p75
      %p82 = scmp.eq.s32.totalorder %s14, 4
      %p83 = por %p81, %p82
      %p84 = scmp.ne.s32.totalorder %s76, %s79
      %p85 = scmp.eq.s32.totalorder %s14, 0
      %p86 = por %p84, %p85
      %p87 = scmp.ne.s32.totalorder %s76, %s79
      %p88 = scmp.eq.s32.totalorder %s19, 4
      %p89 = por %p87, %p88
      %p90 = scmp.ne.s32.totalorder %s79, %s80
      %p91 = scmp.eq.s32.totalorder %s19, 0
      %p92 = por %p90, %p91
      %p93 = scmp.ne.s32.totalorder %s79, %s80
      %p94 = scmp.eq.s32.totalorder %s20, 4
      %p95 = por %p93, %p94
      %p97 = scmp.ne.s32.totalorder %s80, %s96
      %p98 = scmp.eq.s32.totalorder %s20, 0
      %p99 = por %p97, %p98
      %p100 = scmp.le.s32.totalorder 1, %s14
      %p101 = scmp.lt.s32.totalorder %s14, 6
      %p102 = pnand %p100, %p101
      %p103 = pneg %p102
      // Predicated region
      $region9: #{position_encoding_forward.1} parent=5 // pred_check
        _
      $region10: #{position_encoding_forward.1} parent=5 // pred_check_branch
        %105 = sbr.rel (%p102) target = $region12
      $region11: #{position_encoding_forward.1} parent=5 // pred_region
        %s106 = ssub.s32 %s14, 1
      $region12: #{position_encoding_forward.1} parent=5 // pred_fallthru
        _
      %p107 = scmp.lt.s32.totalorder %s14, 5
      // Predicated region
      $region13: #{position_encoding_forward.1} parent=5 // pred_check
        %p108 = pneg %p107
      $region14: #{position_encoding_forward.1} parent=5 // pred_check_branch
        %110 = sbr.rel (%p108) target = $region16
      $region15: #{position_encoding_forward.1} parent=5 // pred_region
        // Predicated region
        $region17: #{position_encoding_forward.1} parent=15 // pred_check
          %p111 = pneg %p34
        $region18: #{position_encoding_forward.1} parent=15 // pred_check_branch
          %113 = sbr.rel (%p111) target = $region20
        $region19: #{position_encoding_forward.1} parent=15 // pred_region
          %s114 = sand.u32 %s24, 1
          %s115 = scalar_lea.sflag [#allocation3], %s114
          %s116 = sand.u32 %s24, 1
          %s117 = smul.addr %s116, 96
          %s118 = scalar_lea.vmem [#allocation2], %s117
          %s119 = smul.u32 12, %s14
          %s120 = ssub.s32 50, %s119
          %p121 = scmp.lt.s32.totalorder %s120, 12
          %s122 = scalar_select %p121, %s120, 12
          %s123 = smul.u32 8, %s122
          %s124 = ssub.s32 96, %s123
          %s125 = sshll.u32 %s124, 4
          %126 = vsyncadd %s115, %s125
          %p127 = scmp.ne.s32.totalorder 0, %s123
          %s128 = smul.addr %s119, 8
          %s129 = scalar_lea.hbm %s0, %s128
          %s130 = smul.u32 8, %s122
          %s131 = sshll.u32 %s129, 4
          %s132 = int_to_ptr.hbm [resolvable:$true] %s131
          %s133 = sshll.u32 %s118, 4
          %s134 = int_to_ptr.vmem [resolvable:$true] %s133
          %s135 = sshll.u32 %s130, 4
          %139 = dma.hbm_to_vmem [thread:$0]  (%p127), %s132, %s135, %s134, %s115, 128, 128, 8
        $region20: #{position_encoding_forward.1} parent=15 // pred_fallthru
          _
        // Predicated region
        $region21: #{position_encoding_forward.1} parent=15 // pred_check
          %p140 = pneg %p60
        $region22: #{position_encoding_forward.1} parent=15 // pred_check_branch
          %142 = sbr.rel (%p140) target = $region24
        $region23: #{position_encoding_forward.1} parent=15 // pred_region
          %s143 = smul.u32 12, %s14
          %s144 = ssub.s32 64, %s143
          %p145 = scmp.lt.s32.totalorder %s144, 12
          %s146 = scalar_select %p145, %s144, 12
          %s147 = smul.u32 8, %s146
          %p148 = scmp.lt.s32.totalorder %s143, 63
          %s149 = scalar_select %p148, %s143, 63
          %s150 = smul.addr %s149, 8
          %s151 = scalar_lea.vmem %s1, %s150
          %s152 = smul.u32 12, %s14
          %s153 = ssub.s32 64, %s152
          %p154 = scmp.lt.s32.totalorder %s153, 12
          %s155 = scalar_select %p154, %s153, 12
          %s156 = smul.u32 8, %s155
        $region24: #{position_encoding_forward.1} parent=15 // pred_fallthru
          _
      $region16: #{position_encoding_forward.1} parent=5 // pred_fallthru
        _
      %p157 = scmp.le.s32.totalorder 1, %s14
      %p158 = scmp.lt.s32.totalorder %s14, 6
      %p159 = pnand %p157, %p158
      %p160 = pneg %p159
      // Predicated region
      $region25: #{position_encoding_forward.1} parent=5 // pred_check
        _
      $region26: #{position_encoding_forward.1} parent=5 // pred_check_branch
        %162 = sbr.rel (%p159) target = $region28
      $region27: #{position_encoding_forward.1} parent=5 // pred_region
        %s163 = ssub.s32 %s14, 1
        %s164 = sand.u32 %s27, 1
        %s165 = scalar_lea.sflag [#allocation3], %s164
        %s166 = sand.u32 %s27, 1
        %s167 = smul.addr %s166, 96
        %s168 = scalar_lea.vmem [#allocation2], %s167
        // Predicated region
        $region29: #{position_encoding_forward.1} parent=27 // pred_check
          %p169 = pneg %p40
        $region30: #{position_encoding_forward.1} parent=27 // pred_check_branch
          %171 = sbr.rel (%p169) target = $region32
        $region31: #{position_encoding_forward.1} parent=27 // pred_region
          %173 = dma.done %s165, 1536
        $region32: #{position_encoding_forward.1} parent=27 // pred_fallthru
          _
        %s174 = sand.u32 %s27, 1
        %s175 = scalar_lea.sflag [#allocation3], %s174
        %s176 = sand.u32 %s27, 1
        %s177 = smul.addr %s176, 96
        %s178 = scalar_lea.vmem [#allocation2], %s177
        %p179 = pneg %p40
        %p180 = pneg %p37
        %s181 = smul.u32 12, %s19
        %s182 = ssub.s32 64, %s181
        %p183 = scmp.lt.s32.totalorder %s182, 12
        %s184 = scalar_select %p183, %s182, 12
        %s185 = smul.u32 8, %s184
        %p186 = scmp.lt.s32.totalorder %s181, 63
        %s187 = scalar_select %p186, %s181, 63
        %s188 = smul.addr %s187, 8
        %s189 = scalar_lea.vmem %s1, %s188
        %p190 = pneg %p66
        %p191 = pneg %p63
        %p192 = pneg %p92
        %p193 = pneg %p89
        %s194 = sand.u32 %s79, 1
        %s195 = scalar_lea.sflag [#allocation4], %s194
        %s196 = sand.u32 %s79, 1
        %s197 = smul.addr %s196, 96
        %s198 = scalar_lea.vmem [#allocation5], %s197
        %s199 = smul.u32 12, %s19
        %s200 = ssub.s32 50, %s199
        %p201 = scmp.lt.s32.totalorder %s200, 12
        %s202 = scalar_select %p201, %s200, 12
        %s203 = smul.u32 8, %s202
        %s204 = smul.u32 12, %s19
        %s205 = ssub.s32 64, %s204
        %p206 = scmp.lt.s32.totalorder %s205, 12
        %s207 = scalar_select %p206, %s205, 12
        %s208 = smul.u32 8, %s207
        %p209 = scmp.lt.s32.totalorder %s204, 63
        %s210 = scalar_select %p209, %s204, 63
        %s211 = smul.addr %s210, 8
        %s212 = scalar_lea.vmem %s1, %s211
        %s213 = smul.u32 12, %s19
        %s214 = ssub.s32 64, %s213
        %p215 = scmp.lt.s32.totalorder %s214, 12
        %s216 = scalar_select %p215, %s214, 12
        %s217 = smul.u32 8, %s216
        %s218 = smul.u32 12, %s19
        %s219 = ssub.s32 50, %s218
        %p220 = scmp.lt.s32.totalorder %s219, 12
        %s221 = scalar_select %p220, %s219, 12
        %s222 = smul.u32 8, %s221
        %v223 = vld [vmem:[%s168] sm:$0xff]
        %v224 = vld [vmem:[%s168 + $0x8] sm:$0xff]
        %v225 = vld [vmem:[%s168 + $0x10] sm:$0xff]
        %v226 = vld [vmem:[%s168 + $0x18] sm:$0xff]
        %v227 = vld [vmem:[%s168 + $0x20] sm:$0xff]
        %v228 = vld [vmem:[%s168 + $0x28] sm:$0xff]
        %v229 = vld [vmem:[%s168 + $0x30] sm:$0xff]
        %v230 = vld [vmem:[%s168 + $0x38] sm:$0xff]
        %v231 = vld [vmem:[%s168 + $0x40] sm:$0xff]
        %v232 = vld [vmem:[%s168 + $0x48] sm:$0xff]
        %v233 = vld [vmem:[%s168 + $0x50] sm:$0xff]
        %v234 = vld [vmem:[%s168 + $0x58] sm:$0xff]
        %v235 = vld [vmem:[%s212] sm:$0xff]
        %v236 = vld [vmem:[%s212 + $0x8] sm:$0xff]
        %v237 = vld [vmem:[%s212 + $0x10] sm:$0xff]
        %v238 = vld [vmem:[%s212 + $0x18] sm:$0xff]
        %v239 = vld [vmem:[%s212 + $0x20] sm:$0xff]
        %v240 = vld [vmem:[%s212 + $0x28] sm:$0xff]
        %v241 = vld [vmem:[%s212 + $0x30] sm:$0xff]
        %v242 = vld [vmem:[%s212 + $0x38] sm:$0xff]
        %v243 = vld [vmem:[%s212 + $0x40] sm:$0xff]
        %v244 = vld [vmem:[%s212 + $0x48] sm:$0xff]
        %v245 = vld [vmem:[%s212 + $0x50] sm:$0xff]
        %v246 = vld [vmem:[%s212 + $0x58] sm:$0xff]
        %v247 = vadd.f32 %v223, %v235
        %v248 = vadd.f32 %v224, %v236
        %v249 = vadd.f32 %v225, %v237
        %v250 = vadd.f32 %v226, %v238
        %v251 = vadd.f32 %v227, %v239
        %v252 = vadd.f32 %v228, %v240
        %v253 = vadd.f32 %v229, %v241
        %v254 = vadd.f32 %v230, %v242
        %v255 = vadd.f32 %v231, %v243
        %v256 = vadd.f32 %v232, %v244
        %v257 = vadd.f32 %v233, %v245
        %v258 = vadd.f32 %v234, %v246
        %259 = vst [vmem:[%s198] sm:$0xff] %v247
        %260 = vst [vmem:[%s198 + $0x8] sm:$0xff] %v248
        %261 = vst [vmem:[%s198 + $0x10] sm:$0xff] %v249
        %262 = vst [vmem:[%s198 + $0x18] sm:$0xff] %v250
        %263 = vst [vmem:[%s198 + $0x20] sm:$0xff] %v251
        %264 = vst [vmem:[%s198 + $0x28] sm:$0xff] %v252
        %265 = vst [vmem:[%s198 + $0x30] sm:$0xff] %v253
        %266 = vst [vmem:[%s198 + $0x38] sm:$0xff] %v254
        %267 = vst [vmem:[%s198 + $0x40] sm:$0xff] %v255
        %268 = vst [vmem:[%s198 + $0x48] sm:$0xff] %v256
        %269 = vst [vmem:[%s198 + $0x50] sm:$0xff] %v257
        %270 = vst [vmem:[%s198 + $0x58] sm:$0xff] %v258
        %s271 = sand.u32 %s79, 1
        %s272 = scalar_lea.sflag [#allocation4], %s271
        %s273 = sand.u32 %s79, 1
        %s274 = smul.addr %s273, 96
        %s275 = scalar_lea.vmem [#allocation5], %s274
        // Predicated region
        $region33: #{position_encoding_forward.1} parent=27 // pred_check
          %p276 = pneg %p89
        $region34: #{position_encoding_forward.1} parent=27 // pred_check_branch
          %278 = sbr.rel (%p276) target = $region36
        $region35: #{position_encoding_forward.1} parent=27 // pred_region
          %s279 = smul.u32 12, %s19
          %s280 = ssub.s32 50, %s279
          %p281 = scmp.lt.s32.totalorder %s280, 12
          %s282 = scalar_select %p281, %s280, 12
          %s283 = smul.u32 8, %s282
          %s284 = ssub.s32 96, %s283
          %s285 = sshll.u32 %s284, 4
          %286 = vsyncadd %s272, %s285
          %p287 = scmp.ne.s32.totalorder 0, %s283
          %s288 = smul.addr %s279, 8
          %s289 = scalar_lea.hbm %s2, %s288
          %s290 = smul.u32 8, %s282
          %s291 = sshll.u32 %s275, 4
          %s292 = int_to_ptr.vmem [resolvable:$true] %s291
          %s293 = sshll.u32 %s289, 4
          %s294 = int_to_ptr.hbm [resolvable:$true] %s293
          %s295 = sshll.u32 %s290, 4
          %299 = dma.vmem_to_hbm [thread:$0]  (%p287), %s292, %s295, %s294, %s272, 128, 128, 8
        $region36: #{position_encoding_forward.1} parent=27 // pred_fallthru
          _
      $region28: #{position_encoding_forward.1} parent=5 // pred_fallthru
        _
      %p300 = scmp.le.s32.totalorder 2, %s14
      // Predicated region
      $region37: #{position_encoding_forward.1} parent=5 // pred_check
        %p301 = pneg %p300
      $region38: #{position_encoding_forward.1} parent=5 // pred_check_branch
        %303 = sbr.rel (%p301) target = $region40
      $region39: #{position_encoding_forward.1} parent=5 // pred_region
        %s304 = ssub.s32 %s14, 2
        // Predicated region
        $region41: #{position_encoding_forward.1} parent=39 // pred_check
          %p305 = pneg %p95
        $region42: #{position_encoding_forward.1} parent=39 // pred_check_branch
          %307 = sbr.rel (%p305) target = $region44
        $region43: #{position_encoding_forward.1} parent=39 // pred_region
          %s308 = sand.u32 %s80, 1
          %s309 = scalar_lea.sflag [#allocation4], %s308
          %s310 = sand.u32 %s80, 1
          %s311 = smul.addr %s310, 96
          %s312 = scalar_lea.vmem [#allocation5], %s311
          %314 = dma.done %s309, 1536
        $region44: #{position_encoding_forward.1} parent=39 // pred_fallthru
          _
      $region40: #{position_encoding_forward.1} parent=5 // pred_fallthru
        _
    $region6: #{position_encoding_forward.1} parent=1 // loop_footer
      %s18 = sadd.s32 1, %s14
    $region7: #{position_encoding_forward.1} parent=1 // loop_footer_branch
      %13 = sbr.rel target = $region3
    $region8: #{position_encoding_forward.1} parent=1 // loop_exit
      _
    %315 = vsyncpa [#allocation3], 1
    %s316 = scalar_lea.sflag [#allocation3], 1
    %317 = vsyncpa %s316, 1
    %318 = vsyncpa [#allocation4], 1
    %s319 = scalar_lea.sflag [#allocation4], 1
    %320 = vsyncpa %s319, 1

</llo_original>
